<compile_context>
chip_gen: v5e
topology: v5e:2x2
jax: 0.10.0
libtpu: 0.0.40
codegen_flags: <defaults>
</compile_context>

<pallas_src>
import jax
import jax.numpy as jnp
from jax.experimental import pallas as pl
from jax.experimental.pallas import tpu as pltpu

HIDDEN = 128


def _round_up(x, m):
    return (x + m - 1) // m * m


def _mlp_kernel(x_ref, w1_ref, b1_ref, w2_ref, b2_ref, w3_ref, b3_ref,
                w4_ref, b4_ref, o_ref):
    mm_dtype = w1_ref.dtype  # matmul input dtype (bf16 or f32); accumulation is f32

    # Layer 1: (TB, K) @ (K, 128) + (1, 128), ReLU  (bias + ReLU in f32)
    h = jnp.dot(x_ref[...], w1_ref[...], preferred_element_type=jnp.float32)
    h = jnp.maximum(h + b1_ref[...], 0.0)

    # Layer 2: (TB, 128) @ (128, 128) + (1, 128), ReLU
    h = jnp.dot(h.astype(mm_dtype), w2_ref[...], preferred_element_type=jnp.float32)
    h = jnp.maximum(h + b2_ref[...], 0.0)

    # Layer 3: (TB, 128) @ (128, 128) + (1, 128), ReLU
    h = jnp.dot(h.astype(mm_dtype), w3_ref[...], preferred_element_type=jnp.float32)
    h = jnp.maximum(h + b3_ref[...], 0.0)

    # Layer 4 (head, no activation): dot with a single 128-vector.
    # VPU elementwise mul + XLU lane reduction instead of an N=1 MXU matmul,
    # which would waste 127/128 MXU columns.  w4_ref is a (1, 128) f32 row.
    head = jnp.sum(h * w4_ref[...], axis=-1, keepdims=True)   # (TB, 1) f32
    o_ref[...] = head + b4_ref[0, 0]                          # b4 scalar from SMEM


def neural_salary_forward(x, params, *, tile_b=2048, matmul_dtype=jnp.bfloat16):
    """x: (B, n_entries) f32.  params: see init_params.  Returns (B, 1) f32."""
    B, n_feat = x.shape
    H = HIDDEN
    K = _round_up(max(n_feat, 1), 128)   # pad features -> full MXU columns in layer 1

    # Batch tile: as large as possible (amortizes per-step pipeline overhead and
    # fills MXU rows), but keep >= 2 grid steps when the batch allows it so v7x's
    # two TensorCores both get work.  Multiple of 16 sublanes (bf16 packing).
    if B >= 2 * tile_b:
        tb = tile_b
    elif B >= 32:
        tb = _round_up((B + 1) // 2, 16)
    else:
        tb = _round_up(B, 16)
    B_pad = _round_up(B, tb)
    grid_b = B_pad // tb

    mm = matmul_dtype
    # One-time host-side prep: zero-pad batch/features and cast matmul operands.
    x_p = jnp.pad(x.astype(mm), ((0, B_pad - B), (0, K - n_feat)))
    w1_p = jnp.pad(params["w1"].astype(mm), ((0, K - n_feat), (0, 0)))
    w2_c = params["w2"].astype(mm)
    w3_c = params["w3"].astype(mm)
    b1, b2, b3 = params["b1"], params["b2"], params["b3"]   # f32
    w4, b4 = params["w4"], params["b4"]                     # f32 (head runs on VPU/XLU)

    in_specs = [
        pl.BlockSpec((tb, K), lambda i: (i, 0)),        # x tile (batch-tiled)
        pl.BlockSpec((K, H), lambda i: (0, 0)),         # w1 (resident)
        pl.BlockSpec((1, H), lambda i: (0, 0)),         # b1
        pl.BlockSpec((H, H), lambda i: (0, 0)),         # w2
        pl.BlockSpec((1, H), lambda i: (0, 0)),         # b2
        pl.BlockSpec((H, H), lambda i: (0, 0)),         # w3
        pl.BlockSpec((1, H), lambda i: (0, 0)),         # b3
        pl.BlockSpec((1, H), lambda i: (0, 0)),         # w4 row (f32)
        pl.BlockSpec(memory_space=pltpu.MemorySpace.SMEM),  # b4 scalar
    ]
    out_specs = pl.BlockSpec((tb, 1), lambda i: (i, 0))

    flops = 2 * B_pad * (K * H + 2 * H * H + H) + 3 * B_pad * H
    bytes_accessed = int(
        x_p.size * x_p.dtype.itemsize
        + sum(a.size * a.dtype.itemsize
              for a in (w1_p, b1, w2_c, b2, w3_c, b3, w4, b4))
        + B_pad * 4)
    cost = pl.CostEstimate(flops=flops, transcendentals=0,
                           bytes_accessed=bytes_accessed)

    out = pl.pallas_call(
        _mlp_kernel,
        out_shape=jax.ShapeDtypeStruct((B_pad, 1), jnp.float32),
        grid_spec=pltpu.PrefetchScalarGridSpec(
            num_scalar_prefetch=0,
            grid=(grid_b,),
            in_specs=in_specs,
            out_specs=out_specs,
        ),
        compiler_params=pltpu.CompilerParams(
            dimension_semantics=("parallel",),
        ),
        cost_estimate=cost,
    )(x_p, w1_p, b1, w2_c, b2, w3_c, b3, w4, b4)

    return out[:B]


def init_params(key, n_entries):
    """Matches the PyTorch module's layer shapes / default init.

    nn.Linear stores weight as (out, in); layers 1-3 are stored here as (in, out)
    so the kernel computes x @ W.  The head weight is kept as a (1, 128) row
    (same as torch) because the kernel consumes it as a broadcast row vector.
    """
    def linear(k, fan_in, fan_out, w_shape):
        kw, kb = jax.random.split(k)
        bound = float(fan_in) ** -0.5
        w = jax.random.uniform(kw, w_shape, jnp.float32, -bound, bound)
        b = jax.random.uniform(kb, (1, fan_out), jnp.float32, -bound, bound)
        return w, b

    k1, k2, k3, k4 = jax.random.split(key, 4)
    w1, b1 = linear(k1, n_entries, HIDDEN, (n_entries, HIDDEN))
    w2, b2 = linear(k2, HIDDEN, HIDDEN, (HIDDEN, HIDDEN))
    w3, b3 = linear(k3, HIDDEN, HIDDEN, (HIDDEN, HIDDEN))
    w4, b4 = linear(k4, HIDDEN, 1, (1, HIDDEN))
    return dict(w1=w1, b1=b1, w2=w2, b2=b2, w3=w3, b3=b3, w4=w4, b4=b4)


def reference_forward(x, p):
    h = jnp.maximum(x @ p["w1"] + p["b1"], 0.0)
    h = jnp.maximum(h @ p["w2"] + p["b2"], 0.0)
    h = jnp.maximum(h @ p["w3"] + p["b3"], 0.0)
    return h @ p["w4"].T + p["b4"]


if __name__ == "__main__":
    key = jax.random.PRNGKey(0)
    k_x, k_p = jax.random.split(key)

    B, n_entries = 1024, 32          # small synthetic shapes (4-step grid at tile_b=256)
    x = jax.random.normal(k_x, (B, n_entries), jnp.float32)
    params = init_params(k_p, n_entries)

    ref = reference_forward(x, params)

    # Default (bf16 matmul inputs, f32 accumulation): relaxed tolerance vs f32 ref.
    out_bf16 = jax.block_until_ready(neural_salary_forward(x, params, tile_b=256))
    assert out_bf16.shape == (B, 1)
    assert jnp.allclose(out_bf16, ref, atol=2e-2, rtol=2e-2), "bf16 path mismatch"

    # Full-f32 path: exact check of kernel structure (padding, head reduction, bias).
    out_f32 = jax.block_until_ready(
        neural_salary_forward(x, params, tile_b=256, matmul_dtype=jnp.float32))
    assert out_f32.shape == (B, 1)
    assert jnp.allclose(out_f32, ref, atol=1e-4, rtol=1e-4), "f32 path mismatch"

    print("KERNEL_OK")
</pallas_src>

<mosaic_0001>
module attributes {stable_mosaic.version = 11 : i64} {
  func.func @_mlp_kernel(%arg0: i32, %arg1: memref<256x128xbf16, #tpu.memory_space<vmem>>, %arg2: memref<128x128xbf16, #tpu.memory_space<vmem>>, %arg3: memref<1x128xf32, #tpu.memory_space<vmem>>, %arg4: memref<128x128xbf16, #tpu.memory_space<vmem>>, %arg5: memref<1x128xf32, #tpu.memory_space<vmem>>, %arg6: memref<128x128xbf16, #tpu.memory_space<vmem>>, %arg7: memref<1x128xf32, #tpu.memory_space<vmem>>, %arg8: memref<1x128xf32, #tpu.memory_space<vmem>>, %arg9: memref<1x1xf32, #tpu.memory_space<smem>>, %arg10: memref<256x1xf32, #tpu.memory_space<vmem>>) attributes {dimension_semantics = [#tpu.dimension_semantics<parallel>], iteration_bounds = array<i64: 4>, scalar_prefetch = 0 : i64, scratch_operands = 0 : i64, tpu.core_type = #tpu.core_type<tc>, window_params = [{transform_indices = @transform_0, window_bounds = array<i64: 256, 128>}, {pipeline_mode = #tpu.pipeline_mode<synchronous>, transform_indices = @transform_1, window_bounds = array<i64: 128, 128>}, {pipeline_mode = #tpu.pipeline_mode<synchronous>, transform_indices = @transform_2, window_bounds = array<i64: 1, 128>}, {pipeline_mode = #tpu.pipeline_mode<synchronous>, transform_indices = @transform_3, window_bounds = array<i64: 128, 128>}, {pipeline_mode = #tpu.pipeline_mode<synchronous>, transform_indices = @transform_4, window_bounds = array<i64: 1, 128>}, {pipeline_mode = #tpu.pipeline_mode<synchronous>, transform_indices = @transform_5, window_bounds = array<i64: 128, 128>}, {pipeline_mode = #tpu.pipeline_mode<synchronous>, transform_indices = @transform_6, window_bounds = array<i64: 1, 128>}, {pipeline_mode = #tpu.pipeline_mode<synchronous>, transform_indices = @transform_7, window_bounds = array<i64: 1, 128>}, {transform_indices = @transform_8, window_bounds = array<i64: 1, 1>}, {transform_indices = @transform_9, window_bounds = array<i64: 256, 1>}]} {
    %c0 = arith.constant 0 : index
    %c0_0 = arith.constant 0 : index
    %0 = vector.load %arg1[%c0, %c0_0] : memref<256x128xbf16, #tpu.memory_space<vmem>>, vector<256x128xbf16>
    %c0_1 = arith.constant 0 : index
    %c0_2 = arith.constant 0 : index
    %1 = vector.load %arg2[%c0_1, %c0_2] : memref<128x128xbf16, #tpu.memory_space<vmem>>, vector<128x128xbf16>
    %cst = arith.constant dense<0.000000e+00> : vector<256x128xf32>
    %2 = tpu.matmul %0, %1, %cst {dimension_numbers = #tpu.dot_dimension_numbers<[1], [0], [0], [1], [0, 0, 1, 1], [], []>} : vector<256x128xbf16>, vector<128x128xbf16>, vector<256x128xf32> -> vector<256x128xf32>
    %c0_3 = arith.constant 0 : index
    %c0_4 = arith.constant 0 : index
    %3 = vector.load %arg3[%c0_3, %c0_4] : memref<1x128xf32, #tpu.memory_space<vmem>>, vector<1x128xf32>
    %4 = vector.broadcast %3 : vector<1x128xf32> to vector<256x128xf32>
    %5 = arith.addf %2, %4 : vector<256x128xf32>
    %cst_5 = arith.constant 0.000000e+00 : f32
    %6 = vector.broadcast %cst_5 : f32 to vector<256x128xf32>
    %7 = arith.maximumf %5, %6 : vector<256x128xf32>
    %8 = arith.truncf %7 : vector<256x128xf32> to vector<256x128xbf16>
    %c0_6 = arith.constant 0 : index
    %c0_7 = arith.constant 0 : index
    %9 = vector.load %arg4[%c0_6, %c0_7] : memref<128x128xbf16, #tpu.memory_space<vmem>>, vector<128x128xbf16>
    %cst_8 = arith.constant dense<0.000000e+00> : vector<256x128xf32>
    %10 = tpu.matmul %8, %9, %cst_8 {dimension_numbers = #tpu.dot_dimension_numbers<[1], [0], [0], [1], [0, 0, 1, 1], [], []>} : vector<256x128xbf16>, vector<128x128xbf16>, vector<256x128xf32> -> vector<256x128xf32>
    %c0_9 = arith.constant 0 : index
    %c0_10 = arith.constant 0 : index
    %11 = vector.load %arg5[%c0_9, %c0_10] : memref<1x128xf32, #tpu.memory_space<vmem>>, vector<1x128xf32>
    %12 = vector.broadcast %11 : vector<1x128xf32> to vector<256x128xf32>
    %13 = arith.addf %10, %12 : vector<256x128xf32>
    %cst_11 = arith.constant 0.000000e+00 : f32
    %14 = vector.broadcast %cst_11 : f32 to vector<256x128xf32>
    %15 = arith.maximumf %13, %14 : vector<256x128xf32>
    %16 = arith.truncf %15 : vector<256x128xf32> to vector<256x128xbf16>
    %c0_12 = arith.constant 0 : index
    %c0_13 = arith.constant 0 : index
    %17 = vector.load %arg6[%c0_12, %c0_13] : memref<128x128xbf16, #tpu.memory_space<vmem>>, vector<128x128xbf16>
    %cst_14 = arith.constant dense<0.000000e+00> : vector<256x128xf32>
    %18 = tpu.matmul %16, %17, %cst_14 {dimension_numbers = #tpu.dot_dimension_numbers<[1], [0], [0], [1], [0, 0, 1, 1], [], []>} : vector<256x128xbf16>, vector<128x128xbf16>, vector<256x128xf32> -> vector<256x128xf32>
    %c0_15 = arith.constant 0 : index
    %c0_16 = arith.constant 0 : index
    %19 = vector.load %arg7[%c0_15, %c0_16] : memref<1x128xf32, #tpu.memory_space<vmem>>, vector<1x128xf32>
    %20 = vector.broadcast %19 : vector<1x128xf32> to vector<256x128xf32>
    %21 = arith.addf %18, %20 : vector<256x128xf32>
    %cst_17 = arith.constant 0.000000e+00 : f32
    %22 = vector.broadcast %cst_17 : f32 to vector<256x128xf32>
    %23 = arith.maximumf %21, %22 : vector<256x128xf32>
    %c0_18 = arith.constant 0 : index
    %c0_19 = arith.constant 0 : index
    %24 = vector.load %arg8[%c0_18, %c0_19] : memref<1x128xf32, #tpu.memory_space<vmem>>, vector<1x128xf32>
    %25 = vector.broadcast %24 : vector<1x128xf32> to vector<256x128xf32>
    %26 = arith.mulf %23, %25 : vector<256x128xf32>
    %cst_20 = arith.constant dense<0.000000e+00> : vector<256xf32>
    %27 = vector.multi_reduction <add>, %26, %cst_20 [1] : vector<256x128xf32> to vector<256xf32>
    %28 = vector.shape_cast %27 : vector<256xf32> to vector<256x1xf32>
    %c0_21 = arith.constant 0 : index
    %c0_22 = arith.constant 0 : index
    %29 = memref.load %arg9[%c0_21, %c0_22] : memref<1x1xf32, #tpu.memory_space<smem>>
    %30 = vector.broadcast %29 : f32 to vector<256x1xf32>
    %31 = arith.addf %28, %30 : vector<256x1xf32>
    %c0_23 = arith.constant 0 : index
    %c0_24 = arith.constant 0 : index
    %32 = vector.load %arg10[%c0_23, %c0_24] : memref<256x1xf32, #tpu.memory_space<vmem>>, vector<256x1xf32>
    tpu.vector_store %arg10[%c0_23, %c0_24], %31 {strides = array<i32>} : memref<256x1xf32, #tpu.memory_space<vmem>>, vector<256x1xf32>,
    return
  }
  func.func @transform_0(%arg0: i32) -> (i32, i32) {
    %c0_i32 = arith.constant 0 : i32
    %c0_i32_0 = arith.constant 0 : i32
    return %arg0, %c0_i32 : i32, i32
  }
  func.func @transform_1(%arg0: i32) -> (i32, i32) {
    %c0_i32 = arith.constant 0 : i32
    %c0_i32_0 = arith.constant 0 : i32
    %c0_i32_1 = arith.constant 0 : i32
    return %c0_i32, %c0_i32_0 : i32, i32
  }
  func.func @transform_2(%arg0: i32) -> (i32, i32) {
    %c0_i32 = arith.constant 0 : i32
    %c0_i32_0 = arith.constant 0 : i32
    %c0_i32_1 = arith.constant 0 : i32
    return %c0_i32, %c0_i32_0 : i32, i32
  }
  func.func @transform_3(%arg0: i32) -> (i32, i32) {
    %c0_i32 = arith.constant 0 : i32
    %c0_i32_0 = arith.constant 0 : i32
    %c0_i32_1 = arith.constant 0 : i32
    return %c0_i32, %c0_i32_0 : i32, i32
  }
  func.func @transform_4(%arg0: i32) -> (i32, i32) {
    %c0_i32 = arith.constant 0 : i32
    %c0_i32_0 = arith.constant 0 : i32
    %c0_i32_1 = arith.constant 0 : i32
    return %c0_i32, %c0_i32_0 : i32, i32
  }
  func.func @transform_5(%arg0: i32) -> (i32, i32) {
    %c0_i32 = arith.constant 0 : i32
    %c0_i32_0 = arith.constant 0 : i32
    %c0_i32_1 = arith.constant 0 : i32
    return %c0_i32, %c0_i32_0 : i32, i32
  }
  func.func @transform_6(%arg0: i32) -> (i32, i32) {
    %c0_i32 = arith.constant 0 : i32
    %c0_i32_0 = arith.constant 0 : i32
    %c0_i32_1 = arith.constant 0 : i32
    return %c0_i32, %c0_i32_0 : i32, i32
  }
  func.func @transform_7(%arg0: i32) -> (i32, i32) {
    %c0_i32 = arith.constant 0 : i32
    %c0_i32_0 = arith.constant 0 : i32
    %c0_i32_1 = arith.constant 0 : i32
    return %c0_i32, %c0_i32_0 : i32, i32
  }
  func.func @transform_8(%arg0: i32) -> (i32, i32) {
    %c0_i32 = arith.constant 0 : i32
    %c0_i32_0 = arith.constant 0 : i32
    %c0_i32_1 = arith.constant 0 : i32
    return %c0_i32, %c0_i32_0 : i32, i32
  }
  func.func @transform_9(%arg0: i32) -> (i32, i32) {
    %c0_i32 = arith.constant 0 : i32
    %c0_i32_0 = arith.constant 0 : i32
    return %arg0, %c0_i32 : i32, i32
  }
}

</mosaic_0001>

<llo_original>
// kernel: tpu_custom_call.1
$region0: #{tpu_custom_call.1}
  #allocation0 [shape = 'u32[]', space=smem, size = 0x4, offset = 0x4, fixed_abs, tag = 'smem constant byte address 0x4 - core index']
  #allocation1 [shape = 'u32[72,128]{1,0:T(1,128)}', space=vmem, size = 0x9000, scoped, tag = 'internal scratch']
  #allocation2 [shape = 'f32[1,1]{1,0:T(1,128)S(6)}', space=smem, size = 0x200, scoped, tag = 'scoped memory for tpu_custom_call.1']
  %s0 = inlined_call_operand.hbm [shape: bf16[1024,128], index: 0, kind: input, shape index: {}]
  %s1 = inlined_call_operand.hbm [shape: bf16[128,128], index: 1, kind: input, shape index: {}]
  %s2 = inlined_call_operand.vmem [shape: f32[1,128], index: 2, kind: input, shape index: {}]
  %s3 = inlined_call_operand.hbm [shape: bf16[128,128], index: 3, kind: input, shape index: {}]
  %s4 = inlined_call_operand.vmem [shape: f32[1,128], index: 4, kind: input, shape index: {}]
  %s5 = inlined_call_operand.hbm [shape: bf16[128,128], index: 5, kind: input, shape index: {}]
  %s6 = inlined_call_operand.vmem [shape: f32[1,128], index: 6, kind: input, shape index: {}]
  %s7 = inlined_call_operand.vmem [shape: f32[1,128], index: 7, kind: input, shape index: {}]
  %s8 = inlined_call_operand.<no memory space> [shape: f32[1,1], index: 8, kind: input, shape index: {}]
  %s9 = inlined_call_operand.vmem [shape: f32[1024,1], index: 9, kind: output, shape index: {}]
  %s10 = sld [smem:[#allocation0]]
  $region85: #{tpu_custom_call.1} parent=0
    _
  %s12 = ssub.s32 1, %s10
  %s13 = scalar_select 0, %s12, %s10
  %14 = sst [smem:[#allocation2]] %s8
  $region1: #{tpu_custom_call.1} parent=0
    #allocation3 [shape = 'u8[131072]{0}', space=vmem, size = 0x20000, scoped, tag = 'input window, operand 0']
    #allocation4 [shape = 's32[2]{0}', space=sflag, size = 0x8, scoped, tag = 'scoped memory for tpu_custom_call.1']
    #allocation5 [shape = 'u8[32768]{0}', space=vmem, size = 0x8000, scoped, tag = 'input window, operand 1, single buffered']
    #allocation6 [shape = 's32[1]{0}', space=sflag, size = 0x4, scoped, tag = 'scoped memory for tpu_custom_call.1']
    #allocation7 [shape = 'u8[32768]{0}', space=vmem, size = 0x8000, scoped, tag = 'input window, operand 3, single buffered']
    #allocation8 [shape = 'u8[32768]{0}', space=vmem, size = 0x8000, scoped, tag = 'input window, operand 5, single buffered']
    #allocation9 [shape = 's32[1]{0}', space=sflag, size = 0x4, scoped, tag = 'scoped memory for tpu_custom_call.1']
    %15 = vsyncpa [#allocation4], 0
    %s16 = scalar_lea.sflag [#allocation4], 1
    %17 = vsyncpa %s16, 0
    %18 = vsyncpa [#allocation6], 0
    %19 = vsyncpa [#allocation9], 0
    loop: start=0, step=1, limit=6
    $region2: #{tpu_custom_call.1} parent=1 // loop_pre_header
      _
    $region3: #{tpu_custom_call.1} parent=1 // loop_header
      %s21 = sphi 0, %s25
      %p22 = scmp.ge.s32.totalorder %s21, 6
      %s31 = sphi 0, %s33
      %s34 = sphi 0, %s31
      %s35 = sphi 0, %s34
      %s51 = sphi 0, %s35
      %s55 = sphi 0, %s55
      %s57 = sphi 0, %s55
      %s58 = sphi 0, %s57
      %s72 = sphi 0, %s58
      %s76 = sphi 0, %s76
      %s78 = sphi 0, %s76
      %s79 = sphi 0, %s78
      %s93 = sphi 0, %s79
      %s97 = sphi 0, %s97
      %s99 = sphi 0, %s97
      %s100 = sphi 0, %s99
      %s114 = sphi 0, %s100
      %s118 = sphi 0, %s118
      %s120 = sphi 0, %s118
      %s121 = sphi 0, %s120
      %s135 = sphi 0, %s121
      %s139 = sphi 0, %s139
      %s141 = sphi 0, %s139
      %s142 = sphi 0, %s141
      %s156 = sphi 0, %s142
      %s160 = sphi 0, %s160
      %s162 = sphi 0, %s160
      %s163 = sphi 0, %s162
      %s177 = sphi 0, %s163
      %s181 = sphi 0, %s181
      %s183 = sphi 0, %s181
      %s184 = sphi 0, %s183
      %s198 = sphi 0, %s184
      %s202 = sphi 0, %s202
      %s204 = sphi 0, %s202
      %s205 = sphi 0, %s204
      %s219 = sphi 0, %s205
      %s225 = sphi 0, %s227
      %s228 = sphi 0, %s225
      %s229 = sphi 0, %s228
      %s245 = sphi 0, %s229
    $region4: #{tpu_custom_call.1} parent=1 // loop_header_branch
      %24 = sbr.rel (%p22) target = $region8
    $region5: #{tpu_custom_call.1} parent=1 // loop_body
      %s26 = ssub.s32 %s21, 1
      %s27 = ssub.s32 %s21, 2
      %s28 = sadd.s32 %s21, 1
      %s29 = ssub.s32 %s21, %s28
      %p30 = scmp.eq.s32.totalorder %s29, 0
      %s32 = sadd.s32 %s31, 1
      %s33 = scalar_select %p30, %s31, %s32
      %p36 = pneg %p30
      %p37 = scmp.eq.s32.totalorder %s21, 3
      %p38 = por %p36, %p37
      %p39 = scmp.ne.s32.totalorder %s31, %s34
      %p40 = scmp.eq.s32.totalorder %s21, 0
      %p41 = por %p39, %p40
      %p42 = scmp.ne.s32.totalorder %s31, %s34
      %p43 = scmp.eq.s32.totalorder %s26, 3
      %p44 = por %p42, %p43
      %p45 = scmp.ne.s32.totalorder %s34, %s35
      %p46 = scmp.eq.s32.totalorder %s26, 0
      %p47 = por %p45, %p46
      %p48 = scmp.ne.s32.totalorder %s34, %s35
      %p49 = scmp.eq.s32.totalorder %s27, 3
      %p50 = por %p48, %p49
      %p52 = scmp.ne.s32.totalorder %s35, %s51
      %p53 = scmp.eq.s32.totalorder %s27, 0
      %p54 = por %p52, %p53
      %s56 = sadd.s32 %s55, 1
      %p59 = scmp.eq.s32.totalorder %s21, 3
      %p60 = scmp.ne.s32.totalorder %s55, %s57
      %p61 = scmp.eq.s32.totalorder %s21, 0
      %p62 = por %p60, %p61
      %p63 = scmp.ne.s32.totalorder %s55, %s57
      %p64 = scmp.eq.s32.totalorder %s26, 3
      %p65 = por %p63, %p64
      %p66 = scmp.ne.s32.totalorder %s57, %s58
      %p67 = scmp.eq.s32.totalorder %s26, 0
      %p68 = por %p66, %p67
      %p69 = scmp.ne.s32.totalorder %s57, %s58
      %p70 = scmp.eq.s32.totalorder %s27, 3
      %p71 = por %p69, %p70
      %p73 = scmp.ne.s32.totalorder %s58, %s72
      %p74 = scmp.eq.s32.totalorder %s27, 0
      %p75 = por %p73, %p74
      %s77 = sadd.s32 %s76, 1
      %p80 = scmp.eq.s32.totalorder %s21, 3
      %p81 = scmp.ne.s32.totalorder %s76, %s78
      %p82 = scmp.eq.s32.totalorder %s21, 0
      %p83 = por %p81, %p82
      %p84 = scmp.ne.s32.totalorder %s76, %s78
      %p85 = scmp.eq.s32.totalorder %s26, 3
      %p86 = por %p84, %p85
      %p87 = scmp.ne.s32.totalorder %s78, %s79
      %p88 = scmp.eq.s32.totalorder %s26, 0
      %p89 = por %p87, %p88
      %p90 = scmp.ne.s32.totalorder %s78, %s79
      %p91 = scmp.eq.s32.totalorder %s27, 3
      %p92 = por %p90, %p91
      %p94 = scmp.ne.s32.totalorder %s79, %s93
      %p95 = scmp.eq.s32.totalorder %s27, 0
      %p96 = por %p94, %p95
      %s98 = sadd.s32 %s97, 1
      %p101 = scmp.eq.s32.totalorder %s21, 3
      %p102 = scmp.ne.s32.totalorder %s97, %s99
      %p103 = scmp.eq.s32.totalorder %s21, 0
      %p104 = por %p102, %p103
      %p105 = scmp.ne.s32.totalorder %s97, %s99
      %p106 = scmp.eq.s32.totalorder %s26, 3
      %p107 = por %p105, %p106
      %p108 = scmp.ne.s32.totalorder %s99, %s100
      %p109 = scmp.eq.s32.totalorder %s26, 0
      %p110 = por %p108, %p109
      %p111 = scmp.ne.s32.totalorder %s99, %s100
      %p112 = scmp.eq.s32.totalorder %s27, 3
      %p113 = por %p111, %p112
      %p115 = scmp.ne.s32.totalorder %s100, %s114
      %p116 = scmp.eq.s32.totalorder %s27, 0
      %p117 = por %p115, %p116
      %s119 = sadd.s32 %s118, 1
      %p122 = scmp.eq.s32.totalorder %s21, 3
      %p123 = scmp.ne.s32.totalorder %s118, %s120
      %p124 = scmp.eq.s32.totalorder %s21, 0
      %p125 = por %p123, %p124
      %p126 = scmp.ne.s32.totalorder %s118, %s120
      %p127 = scmp.eq.s32.totalorder %s26, 3
      %p128 = por %p126, %p127
      %p129 = scmp.ne.s32.totalorder %s120, %s121
      %p130 = scmp.eq.s32.totalorder %s26, 0
      %p131 = por %p129, %p130
      %p132 = scmp.ne.s32.totalorder %s120, %s121
      %p133 = scmp.eq.s32.totalorder %s27, 3
      %p134 = por %p132, %p133
      %p136 = scmp.ne.s32.totalorder %s121, %s135
      %p137 = scmp.eq.s32.totalorder %s27, 0
      %p138 = por %p136, %p137
      %s140 = sadd.s32 %s139, 1
      %p143 = scmp.eq.s32.totalorder %s21, 3
      %p144 = scmp.ne.s32.totalorder %s139, %s141
      %p145 = scmp.eq.s32.totalorder %s21, 0
      %p146 = por %p144, %p145
      %p147 = scmp.ne.s32.totalorder %s139, %s141
      %p148 = scmp.eq.s32.totalorder %s26, 3
      %p149 = por %p147, %p148
      %p150 = scmp.ne.s32.totalorder %s141, %s142
      %p151 = scmp.eq.s32.totalorder %s26, 0
      %p152 = por %p150, %p151
      %p153 = scmp.ne.s32.totalorder %s141, %s142
      %p154 = scmp.eq.s32.totalorder %s27, 3
      %p155 = por %p153, %p154
      %p157 = scmp.ne.s32.totalorder %s142, %s156
      %p158 = scmp.eq.s32.totalorder %s27, 0
      %p159 = por %p157, %p158
      %s161 = sadd.s32 %s160, 1
      %p164 = scmp.eq.s32.totalorder %s21, 3
      %p165 = scmp.ne.s32.totalorder %s160, %s162
      %p166 = scmp.eq.s32.totalorder %s21, 0
      %p167 = por %p165, %p166
      %p168 = scmp.ne.s32.totalorder %s160, %s162
      %p169 = scmp.eq.s32.totalorder %s26, 3
      %p170 = por %p168, %p169
      %p171 = scmp.ne.s32.totalorder %s162, %s163
      %p172 = scmp.eq.s32.totalorder %s26, 0
      %p173 = por %p171, %p172
      %p174 = scmp.ne.s32.totalorder %s162, %s163
      %p175 = scmp.eq.s32.totalorder %s27, 3
      %p176 = por %p174, %p175
      %p178 = scmp.ne.s32.totalorder %s163, %s177
      %p179 = scmp.eq.s32.totalorder %s27, 0
      %p180 = por %p178, %p179
      %s182 = sadd.s32 %s181, 1
      %p185 = scmp.eq.s32.totalorder %s21, 3
      %p186 = scmp.ne.s32.totalorder %s181, %s183
      %p187 = scmp.eq.s32.totalorder %s21, 0
      %p188 = por %p186, %p187
      %p189 = scmp.ne.s32.totalorder %s181, %s183
      %p190 = scmp.eq.s32.totalorder %s26, 3
      %p191 = por %p189, %p190
      %p192 = scmp.ne.s32.totalorder %s183, %s184
      %p193 = scmp.eq.s32.totalorder %s26, 0
      %p194 = por %p192, %p193
      %p195 = scmp.ne.s32.totalorder %s183, %s184
      %p196 = scmp.eq.s32.totalorder %s27, 3
      %p197 = por %p195, %p196
      %p199 = scmp.ne.s32.totalorder %s184, %s198
      %p200 = scmp.eq.s32.totalorder %s27, 0
      %p201 = por %p199, %p200
      %s203 = sadd.s32 %s202, 1
      %p206 = scmp.eq.s32.totalorder %s21, 3
      %p207 = scmp.ne.s32.totalorder %s202, %s204
      %p208 = scmp.eq.s32.totalorder %s21, 0
      %p209 = por %p207, %p208
      %p210 = scmp.ne.s32.totalorder %s202, %s204
      %p211 = scmp.eq.s32.totalorder %s26, 3
      %p212 = por %p210, %p211
      %p213 = scmp.ne.s32.totalorder %s204, %s205
      %p214 = scmp.eq.s32.totalorder %s26, 0
      %p215 = por %p213, %p214
      %p216 = scmp.ne.s32.totalorder %s204, %s205
      %p217 = scmp.eq.s32.totalorder %s27, 3
      %p218 = por %p216, %p217
      %p220 = scmp.ne.s32.totalorder %s205, %s219
      %p221 = scmp.eq.s32.totalorder %s27, 0
      %p222 = por %p220, %p221
      %s223 = ssub.s32 %s21, %s28
      %p224 = scmp.eq.s32.totalorder %s223, 0
      %s226 = sadd.s32 %s225, 1
      %s227 = scalar_select %p224, %s225, %s226
      %p230 = pneg %p224
      %p231 = scmp.eq.s32.totalorder %s21, 3
      %p232 = por %p230, %p231
      %p233 = scmp.ne.s32.totalorder %s225, %s228
      %p234 = scmp.eq.s32.totalorder %s21, 0
      %p235 = por %p233, %p234
      %p236 = scmp.ne.s32.totalorder %s225, %s228
      %p237 = scmp.eq.s32.totalorder %s26, 3
      %p238 = por %p236, %p237
      %p239 = scmp.ne.s32.totalorder %s228, %s229
      %p240 = scmp.eq.s32.totalorder %s26, 0
      %p241 = por %p239, %p240
      %p242 = scmp.ne.s32.totalorder %s228, %s229
      %p243 = scmp.eq.s32.totalorder %s27, 3
      %p244 = por %p242, %p243
      %p246 = scmp.ne.s32.totalorder %s229, %s245
      %p247 = scmp.eq.s32.totalorder %s27, 0
      %p248 = por %p246, %p247
      %p249 = scmp.le.s32.totalorder 1, %s21
      %p250 = scmp.lt.s32.totalorder %s21, 5
      %p251 = pnand %p249, %p250
      %p252 = pneg %p251
      // Predicated region
      $region9: #{tpu_custom_call.1} parent=5 // pred_check
        _
      $region10: #{tpu_custom_call.1} parent=5 // pred_check_branch
        %254 = sbr.rel (%p251) target = $region12
      $region11: #{tpu_custom_call.1} parent=5 // pred_region
        %s255 = ssub.s32 %s21, 1
        // Predicated region
        $region13: #{tpu_custom_call.1} parent=11 // pred_check
          %p256 = pneg %p68
        $region14: #{tpu_custom_call.1} parent=11 // pred_check_branch
          %258 = sbr.rel (%p256) target = $region16
        $region15: #{tpu_custom_call.1} parent=11 // pred_region
          %260 = vsyncadd [#allocation6], 0
          %s261 = sshll.u32 %s1, 4
          %s262 = int_to_ptr.hbm [resolvable:$true] %s261
          %s263 = sshll.u32 [#allocation5], 4
          %s264 = int_to_ptr.vmem [resolvable:$true] %s263
          %269 = dma.hbm_to_vmem [thread:$0]  %s262, 1024, %s264, [#allocation6], 64, 64, 4
        $region16: #{tpu_custom_call.1} parent=11 // pred_fallthru
          _
        // Predicated region
        $region17: #{tpu_custom_call.1} parent=11 // pred_check
          %p270 = pneg %p89
        $region18: #{tpu_custom_call.1} parent=11 // pred_check_branch
          %272 = sbr.rel (%p270) target = $region20
        $region19: #{tpu_custom_call.1} parent=11 // pred_region
          _
        $region20: #{tpu_custom_call.1} parent=11 // pred_fallthru
          _
        // Predicated region
        $region21: #{tpu_custom_call.1} parent=11 // pred_check
          %p273 = pneg %p110
        $region22: #{tpu_custom_call.1} parent=11 // pred_check_branch
          %275 = sbr.rel (%p273) target = $region24
        $region23: #{tpu_custom_call.1} parent=11 // pred_region
          %277 = vsyncadd [#allocation6], 0
          %s278 = sshll.u32 %s3, 4
          %s279 = int_to_ptr.hbm [resolvable:$true] %s278
          %s280 = sshll.u32 [#allocation7], 4
          %s281 = int_to_ptr.vmem [resolvable:$true] %s280
          %286 = dma.hbm_to_vmem [thread:$0]  %s279, 1024, %s281, [#allocation6], 64, 64, 4
        $region24: #{tpu_custom_call.1} parent=11 // pred_fallthru
          _
        // Predicated region
        $region25: #{tpu_custom_call.1} parent=11 // pred_check
          %p287 = pneg %p131
        $region26: #{tpu_custom_call.1} parent=11 // pred_check_branch
          %289 = sbr.rel (%p287) target = $region28
        $region27: #{tpu_custom_call.1} parent=11 // pred_region
          _
        $region28: #{tpu_custom_call.1} parent=11 // pred_fallthru
          _
        // Predicated region
        $region29: #{tpu_custom_call.1} parent=11 // pred_check
          %p290 = pneg %p152
        $region30: #{tpu_custom_call.1} parent=11 // pred_check_branch
          %292 = sbr.rel (%p290) target = $region32
        $region31: #{tpu_custom_call.1} parent=11 // pred_region
          %294 = vsyncadd [#allocation9], 0
          %s295 = sshll.u32 %s5, 4
          %s296 = int_to_ptr.hbm [resolvable:$true] %s295
          %s297 = sshll.u32 [#allocation8], 4
          %s298 = int_to_ptr.vmem [resolvable:$true] %s297
          %303 = dma.hbm_to_vmem [thread:$0]  %s296, 1024, %s298, [#allocation9], 64, 64, 4
        $region32: #{tpu_custom_call.1} parent=11 // pred_fallthru
          _
        // Predicated region
        $region33: #{tpu_custom_call.1} parent=11 // pred_check
          %p304 = pneg %p173
        $region34: #{tpu_custom_call.1} parent=11 // pred_check_branch
          %306 = sbr.rel (%p304) target = $region36
        $region35: #{tpu_custom_call.1} parent=11 // pred_region
          _
        $region36: #{tpu_custom_call.1} parent=11 // pred_fallthru
          _
        // Predicated region
        $region37: #{tpu_custom_call.1} parent=11 // pred_check
          %p307 = pneg %p194
        $region38: #{tpu_custom_call.1} parent=11 // pred_check_branch
          %309 = sbr.rel (%p307) target = $region40
        $region39: #{tpu_custom_call.1} parent=11 // pred_region
          _
        $region40: #{tpu_custom_call.1} parent=11 // pred_fallthru
          _
        // Predicated region
        $region41: #{tpu_custom_call.1} parent=11 // pred_check
          %p310 = pneg %p215
        $region42: #{tpu_custom_call.1} parent=11 // pred_check_branch
          %312 = sbr.rel (%p310) target = $region44
        $region43: #{tpu_custom_call.1} parent=11 // pred_region
          _
        $region44: #{tpu_custom_call.1} parent=11 // pred_fallthru
          _
      $region12: #{tpu_custom_call.1} parent=5 // pred_fallthru
        _
      %p313 = scmp.lt.s32.totalorder %s21, 4
      // Predicated region
      $region45: #{tpu_custom_call.1} parent=5 // pred_check
        %p314 = pneg %p313
      $region46: #{tpu_custom_call.1} parent=5 // pred_check_branch
        %316 = sbr.rel (%p314) target = $region48
      $region47: #{tpu_custom_call.1} parent=5 // pred_region
        // Predicated region
        $region49: #{tpu_custom_call.1} parent=47 // pred_check
          %p317 = pneg %p41
        $region50: #{tpu_custom_call.1} parent=47 // pred_check_branch
          %319 = sbr.rel (%p317) target = $region52
        $region51: #{tpu_custom_call.1} parent=47 // pred_region
          %s320 = sand.u32 %s31, 1
          %s321 = scalar_lea.sflag [#allocation4], %s320
          %s322 = sand.u32 %s31, 1
          %s323 = smul.addr %s322, 128
          %s324 = scalar_lea.vmem [#allocation3], %s323
          %s325 = smul.u32 32, %s21
          %327 = vsyncadd %s321, 0
          %s328 = smul.addr %s325, 4
          %s329 = scalar_lea.hbm %s0, %s328
          %s330 = sshll.u32 %s329, 4
          %s331 = int_to_ptr.hbm [resolvable:$true] %s330
          %s332 = sshll.u32 %s324, 4
          %s333 = int_to_ptr.vmem [resolvable:$true] %s332
          %338 = dma.hbm_to_vmem [thread:$0]  %s331, 2048, %s333, %s321, 64, 64, 4
        $region52: #{tpu_custom_call.1} parent=47 // pred_fallthru
          _
      $region48: #{tpu_custom_call.1} parent=5 // pred_fallthru
        _
      %p339 = scmp.le.s32.totalorder 1, %s21
      %p340 = scmp.lt.s32.totalorder %s21, 5
      %p341 = pnand %p339, %p340
      %p342 = pneg %p341
      // Predicated region
      $region53: #{tpu_custom_call.1} parent=5 // pred_check
        _
      $region54: #{tpu_custom_call.1} parent=5 // pred_check_branch
        %344 = sbr.rel (%p341) target = $region56
      $region55: #{tpu_custom_call.1} parent=5 // pred_region
        %s345 = ssub.s32 %s21, 1
        %s346 = sand.u32 %s34, 1
        %s347 = scalar_lea.sflag [#allocation4], %s346
        %s348 = sand.u32 %s34, 1
        %s349 = smul.addr %s348, 128
        %s350 = scalar_lea.vmem [#allocation3], %s349
        // Predicated region
        $region57: #{tpu_custom_call.1} parent=55 // pred_check
          %p351 = pneg %p47
        $region58: #{tpu_custom_call.1} parent=55 // pred_check_branch
          %353 = sbr.rel (%p351) target = $region60
        $region59: #{tpu_custom_call.1} parent=55 // pred_region
          %355 = dma.done %s347, 2048
        $region60: #{tpu_custom_call.1} parent=55 // pred_fallthru
          _
        // Predicated region
        $region61: #{tpu_custom_call.1} parent=55 // pred_check
          %p356 = pneg %p68
        $region62: #{tpu_custom_call.1} parent=55 // pred_check_branch
          %358 = sbr.rel (%p356) target = $region64
        $region63: #{tpu_custom_call.1} parent=55 // pred_region
          %360 = dma.done [#allocation6], 1024
        $region64: #{tpu_custom_call.1} parent=55 // pred_fallthru
          _
        // Predicated region
        $region65: #{tpu_custom_call.1} parent=55 // pred_check
          %p361 = pneg %p110
        $region66: #{tpu_custom_call.1} parent=55 // pred_check_branch
          %363 = sbr.rel (%p361) target = $region68
        $region67: #{tpu_custom_call.1} parent=55 // pred_region
          %365 = dma.done [#allocation6], 1024
        $region68: #{tpu_custom_call.1} parent=55 // pred_fallthru
          _
        // Predicated region
        $region69: #{tpu_custom_call.1} parent=55 // pred_check
          %p366 = pneg %p152
        $region70: #{tpu_custom_call.1} parent=55 // pred_check_branch
          %368 = sbr.rel (%p366) target = $region72
        $region71: #{tpu_custom_call.1} parent=55 // pred_region
          %370 = dma.done [#allocation9], 1024
        $region72: #{tpu_custom_call.1} parent=55 // pred_fallthru
          _
        %s371 = sand.u32 %s34, 1
        %s372 = scalar_lea.sflag [#allocation4], %s371
        %s373 = sand.u32 %s34, 1
        %s374 = smul.addr %s373, 128
        %s375 = scalar_lea.vmem [#allocation3], %s374
        %p376 = pneg %p47
        %p377 = pneg %p44
        %p378 = pneg %p68
        %p379 = pneg %p65
        %p380 = pneg %p89
        %p381 = pneg %p86
        %p382 = pneg %p110
        %p383 = pneg %p107
        %p384 = pneg %p131
        %p385 = pneg %p128
        %p386 = pneg %p152
        %p387 = pneg %p149
        %p388 = pneg %p173
        %p389 = pneg %p170
        %p390 = pneg %p194
        %p391 = pneg %p191
        %p392 = pneg %p215
        %p393 = pneg %p212
        %p394 = pneg %p241
        %p395 = pneg %p238
        %s396 = smul.u32 32, %s26
        %p397 = scmp.lt.s32.totalorder %s396, 127
        %s398 = scalar_select %p397, %s396, 127
        %s399 = smul.addr %s398, 8
        %s400 = scalar_lea.vmem %s9, %s399
        %s401 = smul.u32 32, %s26
        %s402 = smul.u32 32, %s26
        %p403 = scmp.lt.s32.totalorder %s402, 127
        %s404 = scalar_select %p403, %s402, 127
        %s405 = smul.addr %s404, 8
        %s406 = scalar_lea.vmem %s9, %s405
        %s407 = smul.u32 32, %s26
        %v408 = vld [vmem:[%s350] sm:$0xf]
        %v409 = vld [vmem:[%s350 + $0x4] sm:$0xf]
        %v410 = vld [vmem:[%s350 + $0x8] sm:$0xf]
        %v411 = vld [vmem:[%s350 + $0xc] sm:$0xf]
        %v412 = vld [vmem:[%s350 + $0x10] sm:$0xf]
        %v413 = vld [vmem:[%s350 + $0x14] sm:$0xf]
        %v414 = vld [vmem:[%s350 + $0x18] sm:$0xf]
        %v415 = vld [vmem:[%s350 + $0x1c] sm:$0xf]
        %v416 = vld [vmem:[%s350 + $0x20] sm:$0xf]
        %v417 = vld [vmem:[%s350 + $0x24] sm:$0xf]
        %v418 = vld [vmem:[%s350 + $0x28] sm:$0xf]
        %v419 = vld [vmem:[%s350 + $0x2c] sm:$0xf]
        %v420 = vld [vmem:[%s350 + $0x30] sm:$0xf]
        %v421 = vld [vmem:[%s350 + $0x34] sm:$0xf]
        %v422 = vld [vmem:[%s350 + $0x38] sm:$0xf]
        %v423 = vld [vmem:[%s350 + $0x3c] sm:$0xf]
        %v424 = vld [vmem:[%s350 + $0x40] sm:$0xf]
        %v425 = vld [vmem:[%s350 + $0x44] sm:$0xf]
        %v426 = vld [vmem:[%s350 + $0x48] sm:$0xf]
        %v427 = vld [vmem:[%s350 + $0x4c] sm:$0xf]
        %v428 = vld [vmem:[%s350 + $0x50] sm:$0xf]
        %v429 = vld [vmem:[%s350 + $0x54] sm:$0xf]
        %v430 = vld [vmem:[%s350 + $0x58] sm:$0xf]
        %v431 = vld [vmem:[%s350 + $0x5c] sm:$0xf]
        %v432 = vld [vmem:[%s350 + $0x60] sm:$0xf]
        %v433 = vld [vmem:[%s350 + $0x64] sm:$0xf]
        %v434 = vld [vmem:[%s350 + $0x68] sm:$0xf]
        %v435 = vld [vmem:[%s350 + $0x6c] sm:$0xf]
        %v436 = vld [vmem:[%s350 + $0x70] sm:$0xf]
        %v437 = vld [vmem:[%s350 + $0x74] sm:$0xf]
        %v438 = vld [vmem:[%s350 + $0x78] sm:$0xf]
        %v439 = vld [vmem:[%s350 + $0x7c] sm:$0xf]
        %v440 = vld [vmem:[#allocation5] sm:$0xf]
        %v441 = vld [vmem:[#allocation5 + $0x4] sm:$0xf]
        %v442 = vld [vmem:[#allocation5 + $0x8] sm:$0xf]
        %v443 = vld [vmem:[#allocation5 + $0xc] sm:$0xf]
        %v444 = vld [vmem:[#allocation5 + $0x10] sm:$0xf]
        %v445 = vld [vmem:[#allocation5 + $0x14] sm:$0xf]
        %v446 = vld [vmem:[#allocation5 + $0x18] sm:$0xf]
        %v447 = vld [vmem:[#allocation5 + $0x1c] sm:$0xf]
        %v448 = vld [vmem:[#allocation5 + $0x20] sm:$0xf]
        %v449 = vld [vmem:[#allocation5 + $0x24] sm:$0xf]
        %v450 = vld [vmem:[#allocation5 + $0x28] sm:$0xf]
        %v451 = vld [vmem:[#allocation5 + $0x2c] sm:$0xf]
        %v452 = vld [vmem:[#allocation5 + $0x30] sm:$0xf]
        %v453 = vld [vmem:[#allocation5 + $0x34] sm:$0xf]
        %v454 = vld [vmem:[#allocation5 + $0x38] sm:$0xf]
        %v455 = vld [vmem:[#allocation5 + $0x3c] sm:$0xf]
        %v456 = vld [vmem:[%s2] sm:$0x1]
        %v458 = vperm.slane %v456, 0
        %v492 = vunpack.c.l.b16 %v408
        %v493 = vunpack.c.l.b16 %v409
        %v494 = vunpack.c.l.b16 %v410
        %v495 = vunpack.c.l.b16 %v411
        %v496 = vunpack.c.l.b16 %v412
        %v497 = vunpack.c.l.b16 %v413
        %v498 = vunpack.c.l.b16 %v414
        %v499 = vunpack.c.l.b16 %v415
        %v500 = vunpack.c.l.b16 %v416
        %v501 = vunpack.c.l.b16 %v417
        %v502 = vunpack.c.l.b16 %v418
        %v503 = vunpack.c.l.b16 %v419
        %v504 = vunpack.c.l.b16 %v420
        %v505 = vunpack.c.l.b16 %v421
        %v506 = vunpack.c.l.b16 %v422
        %v507 = vunpack.c.l.b16 %v423
        %v508 = vunpack.c.l.b16 %v424
        %v509 = vunpack.c.l.b16 %v425
        %v510 = vunpack.c.l.b16 %v426
        %v511 = vunpack.c.l.b16 %v427
        %v512 = vunpack.c.l.b16 %v428
        %v513 = vunpack.c.l.b16 %v429
        %v514 = vunpack.c.l.b16 %v430
        %v515 = vunpack.c.l.b16 %v431
        %v516 = vunpack.c.l.b16 %v432
        %v517 = vunpack.c.l.b16 %v433
        %v518 = vunpack.c.l.b16 %v434
        %v519 = vunpack.c.l.b16 %v435
        %v520 = vunpack.c.l.b16 %v436
        %v521 = vunpack.c.l.b16 %v437
        %v522 = vunpack.c.l.b16 %v438
        %v523 = vunpack.c.l.b16 %v439
        %v524 = vpack.c.b16 %v493, %v492
        %v525 = vpack.c.b16 %v495, %v494
        %v526 = vpack.c.b16 %v497, %v496
        %v527 = vpack.c.b16 %v499, %v498
        %v528 = vpack.c.b16 %v501, %v500
        %v529 = vpack.c.b16 %v503, %v502
        %v530 = vpack.c.b16 %v505, %v504
        %v531 = vpack.c.b16 %v507, %v506
        %v532 = vpack.c.b16 %v509, %v508
        %v533 = vpack.c.b16 %v511, %v510
        %v534 = vpack.c.b16 %v513, %v512
        %v535 = vpack.c.b16 %v515, %v514
        %v536 = vpack.c.b16 %v517, %v516
        %v537 = vpack.c.b16 %v519, %v518
        %v538 = vpack.c.b16 %v521, %v520
        %v539 = vpack.c.b16 %v523, %v522
        %v572 = vunpack.c.l.b16 %v440
        %v573 = vunpack.c.l.b16 %v441
        %v574 = vunpack.c.l.b16 %v442
        %v575 = vunpack.c.l.b16 %v443
        %v576 = vunpack.c.l.b16 %v444
        %v577 = vunpack.c.l.b16 %v445
        %v578 = vunpack.c.l.b16 %v446
        %v579 = vunpack.c.l.b16 %v447
        %v580 = vunpack.c.l.b16 %v448
        %v581 = vunpack.c.l.b16 %v449
        %v582 = vunpack.c.l.b16 %v450
        %v583 = vunpack.c.l.b16 %v451
        %v584 = vunpack.c.l.b16 %v452
        %v585 = vunpack.c.l.b16 %v453
        %v586 = vunpack.c.l.b16 %v454
        %v587 = vunpack.c.l.b16 %v455
        %v588 = vpack.c.b16 %v573, %v572
        %v589 = vpack.c.b16 %v575, %v574
        %v590 = vpack.c.b16 %v577, %v576
        %v591 = vpack.c.b16 %v579, %v578
        %v592 = vpack.c.b16 %v581, %v580
        %v593 = vpack.c.b16 %v583, %v582
        %v594 = vpack.c.b16 %v585, %v584
        %v595 = vpack.c.b16 %v587, %v586
        %604 = vmatpush.bf16.msra.mxu0 %v595
        %605 = vmatpush.bf16.msra.mxu0 %v594
        %606 = vmatpush.bf16.msra.mxu0 %v593
        %607 = vmatpush.bf16.msra.mxu0 %v592
        %608 = vmatpush.bf16.msra.mxu0 %v591
        %609 = vmatpush.bf16.msra.mxu0 %v590
        %610 = vmatpush.bf16.msra.mxu0 %v589
        %611 = vmatpush.bf16.msra.mxu0 %v588
        %612 = vmatmul.bf16.gmra.mxu0 %v524
        %v613 = vpop.f32.mrf.mxu0
        %v614 = vadd.f32 %v458, %v613
        %v615 = vpop.f32.mrf.mxu0
        %v616 = vadd.f32 %v458, %v615
        %617 = vmatmul.bf16.gmra.mxu0 %v525
        %v618 = vpop.f32.mrf.mxu0
        %v619 = vadd.f32 %v458, %v618
        %v620 = vpop.f32.mrf.mxu0
        %v621 = vadd.f32 %v458, %v620
        %622 = vmatmul.bf16.gmra.mxu0 %v526
        %v623 = vpop.f32.mrf.mxu0
        %v624 = vadd.f32 %v458, %v623
        %v625 = vpop.f32.mrf.mxu0
        %v626 = vadd.f32 %v458, %v625
        %627 = vmatmul.bf16.gmra.mxu0 %v527
        %v628 = vpop.f32.mrf.mxu0
        %v629 = vadd.f32 %v458, %v628
        %v630 = vpop.f32.mrf.mxu0
        %v631 = vadd.f32 %v458, %v630
        %632 = vmatmul.bf16.gmra.mxu0 %v528
        %v633 = vpop.f32.mrf.mxu0
        %v634 = vadd.f32 %v458, %v633
        %v635 = vpop.f32.mrf.mxu0
        %v636 = vadd.f32 %v458, %v635
        %637 = vmatmul.bf16.gmra.mxu0 %v529
        %v638 = vpop.f32.mrf.mxu0
        %v639 = vadd.f32 %v458, %v638
        %v640 = vpop.f32.mrf.mxu0
        %v641 = vadd.f32 %v458, %v640
        %642 = vmatmul.bf16.gmra.mxu0 %v530
        %v643 = vpop.f32.mrf.mxu0
        %v644 = vadd.f32 %v458, %v643
        %v645 = vpop.f32.mrf.mxu0
        %v646 = vadd.f32 %v458, %v645
        %647 = vmatmul.bf16.gmra.mxu0 %v531
        %v648 = vpop.f32.mrf.mxu0
        %v649 = vadd.f32 %v458, %v648
        %v650 = vpop.f32.mrf.mxu0
        %v651 = vadd.f32 %v458, %v650
        %652 = vmatmul.bf16.gmra.mxu0 %v532
        %v653 = vpop.f32.mrf.mxu0
        %v654 = vadd.f32 %v458, %v653
        %v655 = vpop.f32.mrf.mxu0
        %v656 = vadd.f32 %v458, %v655
        %657 = vmatmul.bf16.gmra.mxu0 %v533
        %v658 = vpop.f32.mrf.mxu0
        %v659 = vadd.f32 %v458, %v658
        %v660 = vpop.f32.mrf.mxu0
        %v661 = vadd.f32 %v458, %v660
        %662 = vmatmul.bf16.gmra.mxu0 %v534
        %v663 = vpop.f32.mrf.mxu0
        %v664 = vadd.f32 %v458, %v663
        %v665 = vpop.f32.mrf.mxu0
        %v666 = vadd.f32 %v458, %v665
        %667 = vmatmul.bf16.gmra.mxu0 %v535
        %v668 = vpop.f32.mrf.mxu0
        %v669 = vadd.f32 %v458, %v668
        %v670 = vpop.f32.mrf.mxu0
        %v671 = vadd.f32 %v458, %v670
        %672 = vmatmul.bf16.gmra.mxu0 %v536
        %v673 = vpop.f32.mrf.mxu0
        %v674 = vadd.f32 %v458, %v673
        %v675 = vpop.f32.mrf.mxu0
        %v676 = vadd.f32 %v458, %v675
        %677 = vmatmul.bf16.gmra.mxu0 %v537
        %v678 = vpop.f32.mrf.mxu0
        %v679 = vadd.f32 %v458, %v678
        %v680 = vpop.f32.mrf.mxu0
        %v681 = vadd.f32 %v458, %v680
        %682 = vmatmul.bf16.gmra.mxu0 %v538
        %v683 = vpop.f32.mrf.mxu0
        %v684 = vadd.f32 %v458, %v683
        %v685 = vpop.f32.mrf.mxu0
        %v686 = vadd.f32 %v458, %v685
        %687 = vmatmul.bf16.gmra.mxu0 %v539
        %v688 = vpop.f32.mrf.mxu0
        %v689 = vadd.f32 %v458, %v688
        %v690 = vpop.f32.mrf.mxu0
        %v691 = vadd.f32 %v458, %v690
        %692 = vdwg.mxu0
        %v693 = vmax.f32 %v614, 0.0
        %v694 = vmax.f32 %v616, 0.0
        %v695 = vmax.f32 %v619, 0.0
        %v696 = vmax.f32 %v621, 0.0
        %v697 = vmax.f32 %v624, 0.0
        %v698 = vmax.f32 %v626, 0.0
        %v699 = vmax.f32 %v629, 0.0
        %v700 = vmax.f32 %v631, 0.0
        %v701 = vmax.f32 %v634, 0.0
        %v702 = vmax.f32 %v636, 0.0
        %v703 = vmax.f32 %v639, 0.0
        %v704 = vmax.f32 %v641, 0.0
        %v705 = vmax.f32 %v644, 0.0
        %v706 = vmax.f32 %v646, 0.0
        %v707 = vmax.f32 %v649, 0.0
        %v708 = vmax.f32 %v651, 0.0
        %v709 = vmax.f32 %v654, 0.0
        %v710 = vmax.f32 %v656, 0.0
        %v711 = vmax.f32 %v659, 0.0
        %v712 = vmax.f32 %v661, 0.0
        %v713 = vmax.f32 %v664, 0.0
        %v714 = vmax.f32 %v666, 0.0
        %v715 = vmax.f32 %v669, 0.0
        %v716 = vmax.f32 %v671, 0.0
        %v717 = vmax.f32 %v674, 0.0
        %v718 = vmax.f32 %v676, 0.0
        %v719 = vmax.f32 %v679, 0.0
        %v720 = vmax.f32 %v681, 0.0
        %v721 = vmax.f32 %v684, 0.0
        %v722 = vmax.f32 %v686, 0.0
        %v723 = vmax.f32 %v689, 0.0
        %v724 = vmax.f32 %v691, 0.0
        %v725 = vpack.c.bf16 %v694, %v693
        %v726 = vpack.c.bf16 %v696, %v695
        %v727 = vpack.c.bf16 %v698, %v697
        %v728 = vpack.c.bf16 %v700, %v699
        %v729 = vpack.c.bf16 %v702, %v701
        %v730 = vpack.c.bf16 %v704, %v703
        %v731 = vpack.c.bf16 %v706, %v705
        %v732 = vpack.c.bf16 %v708, %v707
        %v733 = vpack.c.bf16 %v710, %v709
        %v734 = vpack.c.bf16 %v712, %v711
        %v735 = vpack.c.bf16 %v714, %v713
        %v736 = vpack.c.bf16 %v716, %v715
        %v737 = vpack.c.bf16 %v718, %v717
        %v738 = vpack.c.bf16 %v720, %v719
        %v739 = vpack.c.bf16 %v722, %v721
        %v740 = vpack.c.bf16 %v724, %v723
        %v741 = vld [vmem:[#allocation7] sm:$0xf]
        %v742 = vld [vmem:[#allocation7 + $0x4] sm:$0xf]
        %v743 = vld [vmem:[#allocation7 + $0x8] sm:$0xf]
        %v744 = vld [vmem:[#allocation7 + $0xc] sm:$0xf]
        %v745 = vld [vmem:[#allocation7 + $0x10] sm:$0xf]
        %v746 = vld [vmem:[#allocation7 + $0x14] sm:$0xf]
        %v747 = vld [vmem:[#allocation7 + $0x18] sm:$0xf]
        %v748 = vld [vmem:[#allocation7 + $0x1c] sm:$0xf]
        %v749 = vld [vmem:[#allocation7 + $0x20] sm:$0xf]
        %v750 = vld [vmem:[#allocation7 + $0x24] sm:$0xf]
        %v751 = vld [vmem:[#allocation7 + $0x28] sm:$0xf]
        %v752 = vld [vmem:[#allocation7 + $0x2c] sm:$0xf]
        %v753 = vld [vmem:[#allocation7 + $0x30] sm:$0xf]
        %v754 = vld [vmem:[#allocation7 + $0x34] sm:$0xf]
        %v755 = vld [vmem:[#allocation7 + $0x38] sm:$0xf]
        %v756 = vld [vmem:[#allocation7 + $0x3c] sm:$0xf]
        %v757 = vld [vmem:[%s4] sm:$0x1]
        %v759 = vperm.slane %v757, 0
        %v777 = vunpack.c.l.b16 %v741
        %v778 = vunpack.c.l.b16 %v742
        %v779 = vunpack.c.l.b16 %v743
        %v780 = vunpack.c.l.b16 %v744
        %v781 = vunpack.c.l.b16 %v745
        %v782 = vunpack.c.l.b16 %v746
        %v783 = vunpack.c.l.b16 %v747
        %v784 = vunpack.c.l.b16 %v748
        %v785 = vunpack.c.l.b16 %v749
        %v786 = vunpack.c.l.b16 %v750
        %v787 = vunpack.c.l.b16 %v751
        %v788 = vunpack.c.l.b16 %v752
        %v789 = vunpack.c.l.b16 %v753
        %v790 = vunpack.c.l.b16 %v754
        %v791 = vunpack.c.l.b16 %v755
        %v792 = vunpack.c.l.b16 %v756
        %v793 = vpack.c.b16 %v778, %v777
        %v794 = vpack.c.b16 %v780, %v779
        %v795 = vpack.c.b16 %v782, %v781
        %v796 = vpack.c.b16 %v784, %v783
        %v797 = vpack.c.b16 %v786, %v785
        %v798 = vpack.c.b16 %v788, %v787
        %v799 = vpack.c.b16 %v790, %v789
        %v800 = vpack.c.b16 %v792, %v791
        %809 = vmatpush.bf16.msra.mxu0 %v800
        %810 = vmatpush.bf16.msra.mxu0 %v799
        %811 = vmatpush.bf16.msra.mxu0 %v798
        %812 = vmatpush.bf16.msra.mxu0 %v797
        %813 = vmatpush.bf16.msra.mxu0 %v796
        %814 = vmatpush.bf16.msra.mxu0 %v795
        %815 = vmatpush.bf16.msra.mxu0 %v794
        %816 = vmatpush.bf16.msra.mxu0 %v793
        %817 = vmatmul.bf16.gmra.mxu0 %v725
        %v818 = vpop.f32.mrf.mxu0
        %v819 = vadd.f32 %v759, %v818
        %v820 = vpop.f32.mrf.mxu0
        %v821 = vadd.f32 %v759, %v820
        %822 = vmatmul.bf16.gmra.mxu0 %v726
        %v823 = vpop.f32.mrf.mxu0
        %v824 = vadd.f32 %v759, %v823
        %v825 = vpop.f32.mrf.mxu0
        %v826 = vadd.f32 %v759, %v825
        %827 = vmatmul.bf16.gmra.mxu0 %v727
        %v828 = vpop.f32.mrf.mxu0
        %v829 = vadd.f32 %v759, %v828
        %v830 = vpop.f32.mrf.mxu0
        %v831 = vadd.f32 %v759, %v830
        %832 = vmatmul.bf16.gmra.mxu0 %v728
        %v833 = vpop.f32.mrf.mxu0
        %v834 = vadd.f32 %v759, %v833
        %v835 = vpop.f32.mrf.mxu0
        %v836 = vadd.f32 %v759, %v835
        %837 = vmatmul.bf16.gmra.mxu0 %v729
        %v838 = vpop.f32.mrf.mxu0
        %v839 = vadd.f32 %v759, %v838
        %v840 = vpop.f32.mrf.mxu0
        %v841 = vadd.f32 %v759, %v840
        %842 = vmatmul.bf16.gmra.mxu0 %v730
        %v843 = vpop.f32.mrf.mxu0
        %v844 = vadd.f32 %v759, %v843
        %v845 = vpop.f32.mrf.mxu0
        %v846 = vadd.f32 %v759, %v845
        %847 = vmatmul.bf16.gmra.mxu0 %v731
        %v848 = vpop.f32.mrf.mxu0
        %v849 = vadd.f32 %v759, %v848
        %v850 = vpop.f32.mrf.mxu0
        %v851 = vadd.f32 %v759, %v850
        %852 = vmatmul.bf16.gmra.mxu0 %v732
        %v853 = vpop.f32.mrf.mxu0
        %v854 = vadd.f32 %v759, %v853
        %v855 = vpop.f32.mrf.mxu0
        %v856 = vadd.f32 %v759, %v855
        %857 = vmatmul.bf16.gmra.mxu0 %v733
        %v858 = vpop.f32.mrf.mxu0
        %v859 = vadd.f32 %v759, %v858
        %v860 = vpop.f32.mrf.mxu0
        %v861 = vadd.f32 %v759, %v860
        %862 = vmatmul.bf16.gmra.mxu0 %v734
        %v863 = vpop.f32.mrf.mxu0
        %v864 = vadd.f32 %v759, %v863
        %v865 = vpop.f32.mrf.mxu0
        %v866 = vadd.f32 %v759, %v865
        %867 = vmatmul.bf16.gmra.mxu0 %v735
        %v868 = vpop.f32.mrf.mxu0
        %v869 = vadd.f32 %v759, %v868
        %v870 = vpop.f32.mrf.mxu0
        %v871 = vadd.f32 %v759, %v870
        %872 = vmatmul.bf16.gmra.mxu0 %v736
        %v873 = vpop.f32.mrf.mxu0
        %v874 = vadd.f32 %v759, %v873
        %v875 = vpop.f32.mrf.mxu0
        %v876 = vadd.f32 %v759, %v875
        %877 = vmatmul.bf16.gmra.mxu0 %v737
        %v878 = vpop.f32.mrf.mxu0
        %v879 = vadd.f32 %v759, %v878
        %v880 = vpop.f32.mrf.mxu0
        %v881 = vadd.f32 %v759, %v880
        %882 = vmatmul.bf16.gmra.mxu0 %v738
        %v883 = vpop.f32.mrf.mxu0
        %v884 = vadd.f32 %v759, %v883
        %v885 = vpop.f32.mrf.mxu0
        %v886 = vadd.f32 %v759, %v885
        %887 = vmatmul.bf16.gmra.mxu0 %v739
        %v888 = vpop.f32.mrf.mxu0
        %v889 = vadd.f32 %v759, %v888
        %v890 = vpop.f32.mrf.mxu0
        %v891 = vadd.f32 %v759, %v890
        %892 = vmatmul.bf16.gmra.mxu0 %v740
        %v893 = vpop.f32.mrf.mxu0
        %v894 = vadd.f32 %v759, %v893
        %v895 = vpop.f32.mrf.mxu0
        %v896 = vadd.f32 %v759, %v895
        %897 = vdwg.mxu0
        %v898 = vmax.f32 %v819, 0.0
        %v899 = vmax.f32 %v821, 0.0
        %v900 = vmax.f32 %v824, 0.0
        %v901 = vmax.f32 %v826, 0.0
        %v902 = vmax.f32 %v829, 0.0
        %v903 = vmax.f32 %v831, 0.0
        %v904 = vmax.f32 %v834, 0.0
        %v905 = vmax.f32 %v836, 0.0
        %v906 = vmax.f32 %v839, 0.0
        %v907 = vmax.f32 %v841, 0.0
        %v908 = vmax.f32 %v844, 0.0
        %v909 = vmax.f32 %v846, 0.0
        %v910 = vmax.f32 %v849, 0.0
        %v911 = vmax.f32 %v851, 0.0
        %v912 = vmax.f32 %v854, 0.0
        %v913 = vmax.f32 %v856, 0.0
        %v914 = vmax.f32 %v859, 0.0
        %v915 = vmax.f32 %v861, 0.0
        %v916 = vmax.f32 %v864, 0.0
        %v917 = vmax.f32 %v866, 0.0
        %v918 = vmax.f32 %v869, 0.0
        %v919 = vmax.f32 %v871, 0.0
        %v920 = vmax.f32 %v874, 0.0
        %v921 = vmax.f32 %v876, 0.0
        %v922 = vmax.f32 %v879, 0.0
        %v923 = vmax.f32 %v881, 0.0
        %v924 = vmax.f32 %v884, 0.0
        %v925 = vmax.f32 %v886, 0.0
        %v926 = vmax.f32 %v889, 0.0
        %v927 = vmax.f32 %v891, 0.0
        %v928 = vmax.f32 %v894, 0.0
        %v929 = vmax.f32 %v896, 0.0
        %v930 = vpack.c.bf16 %v899, %v898
        %v931 = vpack.c.bf16 %v901, %v900
        %v932 = vpack.c.bf16 %v903, %v902
        %v933 = vpack.c.bf16 %v905, %v904
        %v934 = vpack.c.bf16 %v907, %v906
        %v935 = vpack.c.bf16 %v909, %v908
        %v936 = vpack.c.bf16 %v911, %v910
        %v937 = vpack.c.bf16 %v913, %v912
        %v938 = vpack.c.bf16 %v915, %v914
        %v939 = vpack.c.bf16 %v917, %v916
        %v940 = vpack.c.bf16 %v919, %v918
        %v941 = vpack.c.bf16 %v921, %v920
        %v942 = vpack.c.bf16 %v923, %v922
        %v943 = vpack.c.bf16 %v925, %v924
        %v944 = vpack.c.bf16 %v927, %v926
        %v945 = vpack.c.bf16 %v929, %v928
        %v946 = vld [vmem:[#allocation8] sm:$0xf]
        %v947 = vld [vmem:[#allocation8 + $0x4] sm:$0xf]
        %v948 = vld [vmem:[#allocation8 + $0x8] sm:$0xf]
        %v949 = vld [vmem:[#allocation8 + $0xc] sm:$0xf]
        %v950 = vld [vmem:[#allocation8 + $0x10] sm:$0xf]
        %v951 = vld [vmem:[#allocation8 + $0x14] sm:$0xf]
        %v952 = vld [vmem:[#allocation8 + $0x18] sm:$0xf]
        %v953 = vld [vmem:[#allocation8 + $0x1c] sm:$0xf]
        %v954 = vld [vmem:[#allocation8 + $0x20] sm:$0xf]
        %v955 = vld [vmem:[#allocation8 + $0x24] sm:$0xf]
        %v956 = vld [vmem:[#allocation8 + $0x28] sm:$0xf]
        %v957 = vld [vmem:[#allocation8 + $0x2c] sm:$0xf]
        %v958 = vld [vmem:[#allocation8 + $0x30] sm:$0xf]
        %v959 = vld [vmem:[#allocation8 + $0x34] sm:$0xf]
        %v960 = vld [vmem:[#allocation8 + $0x38] sm:$0xf]
        %v961 = vld [vmem:[#allocation8 + $0x3c] sm:$0xf]
        %v962 = vld [vmem:[%s6] sm:$0x1]
        %v964 = vperm.slane %v962, 0
        %v982 = vunpack.c.l.b16 %v946
        %v983 = vunpack.c.l.b16 %v947
        %v984 = vunpack.c.l.b16 %v948
        %v985 = vunpack.c.l.b16 %v949
        %v986 = vunpack.c.l.b16 %v950
        %v987 = vunpack.c.l.b16 %v951
        %v988 = vunpack.c.l.b16 %v952
        %v989 = vunpack.c.l.b16 %v953
        %v990 = vunpack.c.l.b16 %v954
        %v991 = vunpack.c.l.b16 %v955
        %v992 = vunpack.c.l.b16 %v956
        %v993 = vunpack.c.l.b16 %v957
        %v994 = vunpack.c.l.b16 %v958
        %v995 = vunpack.c.l.b16 %v959
        %v996 = vunpack.c.l.b16 %v960
        %v997 = vunpack.c.l.b16 %v961
        %v998 = vpack.c.b16 %v983, %v982
        %v999 = vpack.c.b16 %v985, %v984
        %v1000 = vpack.c.b16 %v987, %v986
        %v1001 = vpack.c.b16 %v989, %v988
        %v1002 = vpack.c.b16 %v991, %v990
        %v1003 = vpack.c.b16 %v993, %v992
        %v1004 = vpack.c.b16 %v995, %v994
        %v1005 = vpack.c.b16 %v997, %v996
        %1014 = vmatpush.bf16.msra.mxu0 %v1005
        %1015 = vmatpush.bf16.msra.mxu0 %v1004
        %1016 = vmatpush.bf16.msra.mxu0 %v1003
        %1017 = vmatpush.bf16.msra.mxu0 %v1002
        %1018 = vmatpush.bf16.msra.mxu0 %v1001
        %1019 = vmatpush.bf16.msra.mxu0 %v1000
        %1020 = vmatpush.bf16.msra.mxu0 %v999
        %1021 = vmatpush.bf16.msra.mxu0 %v998
        %1022 = vmatmul.bf16.gmra.mxu0 %v930
        %v1023 = vpop.f32.mrf.mxu0
        %v1024 = vadd.f32 %v964, %v1023
        %v1025 = vpop.f32.mrf.mxu0
        %v1026 = vadd.f32 %v964, %v1025
        %1027 = vmatmul.bf16.gmra.mxu0 %v931
        %v1028 = vpop.f32.mrf.mxu0
        %v1029 = vadd.f32 %v964, %v1028
        %v1030 = vpop.f32.mrf.mxu0
        %v1031 = vadd.f32 %v964, %v1030
        %1032 = vmatmul.bf16.gmra.mxu0 %v932
        %v1033 = vpop.f32.mrf.mxu0
        %v1034 = vadd.f32 %v964, %v1033
        %v1035 = vpop.f32.mrf.mxu0
        %v1036 = vadd.f32 %v964, %v1035
        %1037 = vmatmul.bf16.gmra.mxu0 %v933
        %v1038 = vpop.f32.mrf.mxu0
        %v1039 = vadd.f32 %v964, %v1038
        %v1040 = vpop.f32.mrf.mxu0
        %v1041 = vadd.f32 %v964, %v1040
        %1042 = vmatmul.bf16.gmra.mxu0 %v934
        %v1043 = vpop.f32.mrf.mxu0
        %v1044 = vadd.f32 %v964, %v1043
        %v1045 = vpop.f32.mrf.mxu0
        %v1046 = vadd.f32 %v964, %v1045
        %1047 = vmatmul.bf16.gmra.mxu0 %v935
        %v1048 = vpop.f32.mrf.mxu0
        %v1049 = vadd.f32 %v964, %v1048
        %v1050 = vpop.f32.mrf.mxu0
        %v1051 = vadd.f32 %v964, %v1050
        %1052 = vmatmul.bf16.gmra.mxu0 %v936
        %v1053 = vpop.f32.mrf.mxu0
        %v1054 = vadd.f32 %v964, %v1053
        %v1055 = vpop.f32.mrf.mxu0
        %v1056 = vadd.f32 %v964, %v1055
        %1057 = vmatmul.bf16.gmra.mxu0 %v937
        %v1058 = vpop.f32.mrf.mxu0
        %v1059 = vadd.f32 %v964, %v1058
        %v1060 = vpop.f32.mrf.mxu0
        %v1061 = vadd.f32 %v964, %v1060
        %1062 = vmatmul.bf16.gmra.mxu0 %v938
        %v1063 = vpop.f32.mrf.mxu0
        %v1064 = vadd.f32 %v964, %v1063
        %v1065 = vpop.f32.mrf.mxu0
        %v1066 = vadd.f32 %v964, %v1065
        %1067 = vmatmul.bf16.gmra.mxu0 %v939
        %v1068 = vpop.f32.mrf.mxu0
        %v1069 = vadd.f32 %v964, %v1068
        %v1070 = vpop.f32.mrf.mxu0
        %v1071 = vadd.f32 %v964, %v1070
        %1072 = vmatmul.bf16.gmra.mxu0 %v940
        %v1073 = vpop.f32.mrf.mxu0
        %v1074 = vadd.f32 %v964, %v1073
        %v1075 = vpop.f32.mrf.mxu0
        %v1076 = vadd.f32 %v964, %v1075
        %1077 = vmatmul.bf16.gmra.mxu0 %v941
        %v1078 = vpop.f32.mrf.mxu0
        %v1079 = vadd.f32 %v964, %v1078
        %v1080 = vpop.f32.mrf.mxu0
        %v1081 = vadd.f32 %v964, %v1080
        %1082 = vmatmul.bf16.gmra.mxu0 %v942
        %v1083 = vpop.f32.mrf.mxu0
        %v1084 = vadd.f32 %v964, %v1083
        %v1085 = vpop.f32.mrf.mxu0
        %v1086 = vadd.f32 %v964, %v1085
        %1087 = vmatmul.bf16.gmra.mxu0 %v943
        %v1088 = vpop.f32.mrf.mxu0
        %v1089 = vadd.f32 %v964, %v1088
        %v1090 = vpop.f32.mrf.mxu0
        %v1091 = vadd.f32 %v964, %v1090
        %1092 = vmatmul.bf16.gmra.mxu0 %v944
        %v1093 = vpop.f32.mrf.mxu0
        %v1094 = vadd.f32 %v964, %v1093
        %v1095 = vpop.f32.mrf.mxu0
        %v1096 = vadd.f32 %v964, %v1095
        %1097 = vmatmul.bf16.gmra.mxu0 %v945
        %v1098 = vpop.f32.mrf.mxu0
        %v1099 = vadd.f32 %v964, %v1098
        %v1100 = vpop.f32.mrf.mxu0
        %v1101 = vadd.f32 %v964, %v1100
        %1102 = vdwg.mxu0
        %v1103 = vmax.f32 %v1024, 0.0
        %v1104 = vmax.f32 %v1026, 0.0
        %v1105 = vmax.f32 %v1029, 0.0
        %v1106 = vmax.f32 %v1031, 0.0
        %v1107 = vmax.f32 %v1034, 0.0
        %v1108 = vmax.f32 %v1036, 0.0
        %v1109 = vmax.f32 %v1039, 0.0
        %v1110 = vmax.f32 %v1041, 0.0
        %v1111 = vmax.f32 %v1044, 0.0
        %v1112 = vmax.f32 %v1046, 0.0
        %v1113 = vmax.f32 %v1049, 0.0
        %v1114 = vmax.f32 %v1051, 0.0
        %v1115 = vmax.f32 %v1054, 0.0
        %v1116 = vmax.f32 %v1056, 0.0
        %v1117 = vmax.f32 %v1059, 0.0
        %v1118 = vmax.f32 %v1061, 0.0
        %v1119 = vmax.f32 %v1064, 0.0
        %v1120 = vmax.f32 %v1066, 0.0
        %v1121 = vmax.f32 %v1069, 0.0
        %v1122 = vmax.f32 %v1071, 0.0
        %v1123 = vmax.f32 %v1074, 0.0
        %v1124 = vmax.f32 %v1076, 0.0
        %v1125 = vmax.f32 %v1079, 0.0
        %v1126 = vmax.f32 %v1081, 0.0
        %v1127 = vmax.f32 %v1084, 0.0
        %v1128 = vmax.f32 %v1086, 0.0
        %v1129 = vmax.f32 %v1089, 0.0
        %v1130 = vmax.f32 %v1091, 0.0
        %v1131 = vmax.f32 %v1094, 0.0
        %v1132 = vmax.f32 %v1096, 0.0
        %v1133 = vmax.f32 %v1099, 0.0
        %v1134 = vmax.f32 %v1101, 0.0
        %v1135 = vld [vmem:[%s7] sm:$0x1]
        %v1137 = vperm.slane %v1135, 0
        %v1139 = vmul.f32 %v1103, %v1137
        %v1140 = vmul.f32 %v1104, %v1137
        %v1141 = vmul.f32 %v1105, %v1137
        %v1142 = vmul.f32 %v1106, %v1137
        %v1143 = vmul.f32 %v1107, %v1137
        %v1144 = vmul.f32 %v1108, %v1137
        %v1145 = vmul.f32 %v1109, %v1137
        %v1146 = vmul.f32 %v1110, %v1137
        %v1147 = vmul.f32 %v1111, %v1137
        %v1148 = vmul.f32 %v1112, %v1137
        %v1149 = vmul.f32 %v1113, %v1137
        %v1150 = vmul.f32 %v1114, %v1137
        %v1151 = vmul.f32 %v1115, %v1137
        %v1152 = vmul.f32 %v1116, %v1137
        %v1153 = vmul.f32 %v1117, %v1137
        %v1154 = vmul.f32 %v1118, %v1137
        %v1155 = vmul.f32 %v1119, %v1137
        %v1156 = vmul.f32 %v1120, %v1137
        %v1157 = vmul.f32 %v1121, %v1137
        %v1158 = vmul.f32 %v1122, %v1137
        %v1159 = vmul.f32 %v1123, %v1137
        %v1160 = vmul.f32 %v1124, %v1137
        %v1161 = vmul.f32 %v1125, %v1137
        %v1162 = vmul.f32 %v1126, %v1137
        %v1163 = vmul.f32 %v1127, %v1137
        %v1164 = vmul.f32 %v1128, %v1137
        %v1165 = vmul.f32 %v1129, %v1137
        %v1166 = vmul.f32 %v1130, %v1137
        %v1167 = vmul.f32 %v1131, %v1137
        %v1168 = vmul.f32 %v1132, %v1137
        %v1169 = vmul.f32 %v1133, %v1137
        %v1170 = vmul.f32 %v1134, %v1137
        %1171 = vadd.xlane.f32.xlu0 %v1139
        %v1172 = vpop.xlane.xlu0 %1171
        %1173 = vadd.xlane.f32.xlu0 %v1140
        %v1174 = vpop.xlane.xlu0 %1173
        %1175 = vadd.xlane.f32.xlu0 %v1141
        %v1176 = vpop.xlane.xlu0 %1175
        %1177 = vadd.xlane.f32.xlu0 %v1142
        %v1178 = vpop.xlane.xlu0 %1177
        %1179 = vadd.xlane.f32.xlu0 %v1143
        %v1180 = vpop.xlane.xlu0 %1179
        %1181 = vadd.xlane.f32.xlu0 %v1144
        %v1182 = vpop.xlane.xlu0 %1181
        %1183 = vadd.xlane.f32.xlu0 %v1145
        %v1184 = vpop.xlane.xlu0 %1183
        %1185 = vadd.xlane.f32.xlu0 %v1146
        %v1186 = vpop.xlane.xlu0 %1185
        %1187 = vadd.xlane.f32.xlu0 %v1147
        %v1188 = vpop.xlane.xlu0 %1187
        %1189 = vadd.xlane.f32.xlu0 %v1148
        %v1190 = vpop.xlane.xlu0 %1189
        %1191 = vadd.xlane.f32.xlu0 %v1149
        %v1192 = vpop.xlane.xlu0 %1191
        %1193 = vadd.xlane.f32.xlu0 %v1150
        %v1194 = vpop.xlane.xlu0 %1193
        %1195 = vadd.xlane.f32.xlu0 %v1151
        %v1196 = vpop.xlane.xlu0 %1195
        %1197 = vadd.xlane.f32.xlu0 %v1152
        %v1198 = vpop.xlane.xlu0 %1197
        %1199 = vadd.xlane.f32.xlu0 %v1153
        %v1200 = vpop.xlane.xlu0 %1199
        %1201 = vadd.xlane.f32.xlu0 %v1154
        %v1202 = vpop.xlane.xlu0 %1201
        %1203 = vadd.xlane.f32.xlu0 %v1155
        %v1204 = vpop.xlane.xlu0 %1203
        %1205 = vadd.xlane.f32.xlu0 %v1156
        %v1206 = vpop.xlane.xlu0 %1205
        %1207 = vadd.xlane.f32.xlu0 %v1157
        %v1208 = vpop.xlane.xlu0 %1207
        %1209 = vadd.xlane.f32.xlu0 %v1158
        %v1210 = vpop.xlane.xlu0 %1209
        %1211 = vadd.xlane.f32.xlu0 %v1159
        %v1212 = vpop.xlane.xlu0 %1211
        %1213 = vadd.xlane.f32.xlu0 %v1160
        %v1214 = vpop.xlane.xlu0 %1213
        %1215 = vadd.xlane.f32.xlu0 %v1161
        %v1216 = vpop.xlane.xlu0 %1215
        %1217 = vadd.xlane.f32.xlu0 %v1162
        %v1218 = vpop.xlane.xlu0 %1217
        %1219 = vadd.xlane.f32.xlu0 %v1163
        %v1220 = vpop.xlane.xlu0 %1219
        %1221 = vadd.xlane.f32.xlu0 %v1164
        %v1222 = vpop.xlane.xlu0 %1221
        %1223 = vadd.xlane.f32.xlu0 %v1165
        %v1224 = vpop.xlane.xlu0 %1223
        %1225 = vadd.xlane.f32.xlu0 %v1166
        %v1226 = vpop.xlane.xlu0 %1225
        %1227 = vadd.xlane.f32.xlu0 %v1167
        %v1228 = vpop.xlane.xlu0 %1227
        %1229 = vadd.xlane.f32.xlu0 %v1168
        %v1230 = vpop.xlane.xlu0 %1229
        %1231 = vadd.xlane.f32.xlu0 %v1169
        %v1232 = vpop.xlane.xlu0 %1231
        %1233 = vadd.xlane.f32.xlu0 %v1170
        %v1234 = vpop.xlane.xlu0 %1233
        %s1235 = sld [smem:[#allocation2]]
        %v1236 = vstv %s1235
        %v1237 = vadd.f32 %v1172, %v1236
        %v1238 = vadd.f32 %v1174, %v1236
        %v1239 = vadd.f32 %v1176, %v1236
        %v1240 = vadd.f32 %v1178, %v1236
        %v1241 = vadd.f32 %v1180, %v1236
        %v1242 = vadd.f32 %v1182, %v1236
        %v1243 = vadd.f32 %v1184, %v1236
        %v1244 = vadd.f32 %v1186, %v1236
        %v1245 = vadd.f32 %v1188, %v1236
        %v1246 = vadd.f32 %v1190, %v1236
        %v1247 = vadd.f32 %v1192, %v1236
        %v1248 = vadd.f32 %v1194, %v1236
        %v1249 = vadd.f32 %v1196, %v1236
        %v1250 = vadd.f32 %v1198, %v1236
        %v1251 = vadd.f32 %v1200, %v1236
        %v1252 = vadd.f32 %v1202, %v1236
        %v1253 = vadd.f32 %v1204, %v1236
        %v1254 = vadd.f32 %v1206, %v1236
        %v1255 = vadd.f32 %v1208, %v1236
        %v1256 = vadd.f32 %v1210, %v1236
        %v1257 = vadd.f32 %v1212, %v1236
        %v1258 = vadd.f32 %v1214, %v1236
        %v1259 = vadd.f32 %v1216, %v1236
        %v1260 = vadd.f32 %v1218, %v1236
        %v1261 = vadd.f32 %v1220, %v1236
        %v1262 = vadd.f32 %v1222, %v1236
        %v1263 = vadd.f32 %v1224, %v1236
        %v1264 = vadd.f32 %v1226, %v1236
        %v1265 = vadd.f32 %v1228, %v1236
        %v1266 = vadd.f32 %v1230, %v1236
        %v1267 = vadd.f32 %v1232, %v1236
        %v1268 = vadd.f32 %v1234, %v1236
        %vm1269 = vcmask 7168
        %1270 = vst.msk [vmem:[%s406] sm:$0xff] %vm1269, %v1237
        %1271 = vst.msk [vmem:[%s406 + $0x8] sm:$0xff] %vm1269, %v1238
        %1272 = vst.msk [vmem:[%s406 + $0x10] sm:$0xff] %vm1269, %v1239
        %1273 = vst.msk [vmem:[%s406 + $0x18] sm:$0xff] %vm1269, %v1240
        %1274 = vst.msk [vmem:[%s406 + $0x20] sm:$0xff] %vm1269, %v1241
        %1275 = vst.msk [vmem:[%s406 + $0x28] sm:$0xff] %vm1269, %v1242
        %1276 = vst.msk [vmem:[%s406 + $0x30] sm:$0xff] %vm1269, %v1243
        %1277 = vst.msk [vmem:[%s406 + $0x38] sm:$0xff] %vm1269, %v1244
        %1278 = vst.msk [vmem:[%s406 + $0x40] sm:$0xff] %vm1269, %v1245
        %1279 = vst.msk [vmem:[%s406 + $0x48] sm:$0xff] %vm1269, %v1246
        %1280 = vst.msk [vmem:[%s406 + $0x50] sm:$0xff] %vm1269, %v1247
        %1281 = vst.msk [vmem:[%s406 + $0x58] sm:$0xff] %vm1269, %v1248
        %1282 = vst.msk [vmem:[%s406 + $0x60] sm:$0xff] %vm1269, %v1249
        %1283 = vst.msk [vmem:[%s406 + $0x68] sm:$0xff] %vm1269, %v1250
        %1284 = vst.msk [vmem:[%s406 + $0x70] sm:$0xff] %vm1269, %v1251
        %1285 = vst.msk [vmem:[%s406 + $0x78] sm:$0xff] %vm1269, %v1252
        %1286 = vst.msk [vmem:[%s406 + $0x80] sm:$0xff] %vm1269, %v1253
        %1287 = vst.msk [vmem:[%s406 + $0x88] sm:$0xff] %vm1269, %v1254
        %1288 = vst.msk [vmem:[%s406 + $0x90] sm:$0xff] %vm1269, %v1255
        %1289 = vst.msk [vmem:[%s406 + $0x98] sm:$0xff] %vm1269, %v1256
        %1290 = vst.msk [vmem:[%s406 + $0xa0] sm:$0xff] %vm1269, %v1257
        %1291 = vst.msk [vmem:[%s406 + $0xa8] sm:$0xff] %vm1269, %v1258
        %1292 = vst.msk [vmem:[%s406 + $0xb0] sm:$0xff] %vm1269, %v1259
        %1293 = vst.msk [vmem:[%s406 + $0xb8] sm:$0xff] %vm1269, %v1260
        %1294 = vst.msk [vmem:[%s406 + $0xc0] sm:$0xff] %vm1269, %v1261
        %1295 = vst.msk [vmem:[%s406 + $0xc8] sm:$0xff] %vm1269, %v1262
        %1296 = vst.msk [vmem:[%s406 + $0xd0] sm:$0xff] %vm1269, %v1263
        %1297 = vst.msk [vmem:[%s406 + $0xd8] sm:$0xff] %vm1269, %v1264
        %1298 = vst.msk [vmem:[%s406 + $0xe0] sm:$0xff] %vm1269, %v1265
        %1299 = vst.msk [vmem:[%s406 + $0xe8] sm:$0xff] %vm1269, %v1266
        %1300 = vst.msk [vmem:[%s406 + $0xf0] sm:$0xff] %vm1269, %v1267
        %1301 = vst.msk [vmem:[%s406 + $0xf8] sm:$0xff] %vm1269, %v1268
        %s1302 = smul.u32 32, %s26
        %p1303 = scmp.lt.s32.totalorder %s1302, 127
        %s1304 = scalar_select %p1303, %s1302, 127
        %s1305 = smul.addr %s1304, 8
        %s1306 = scalar_lea.vmem %s9, %s1305
        // Predicated region
        $region73: #{tpu_custom_call.1} parent=55 // pred_check
          %p1307 = pneg %p238
        $region74: #{tpu_custom_call.1} parent=55 // pred_check_branch
          %1309 = sbr.rel (%p1307) target = $region76
        $region75: #{tpu_custom_call.1} parent=55 // pred_region
          %s1310 = smul.u32 32, %s26
        $region76: #{tpu_custom_call.1} parent=55 // pred_fallthru
          _
      $region56: #{tpu_custom_call.1} parent=5 // pred_fallthru
        _
      %p1311 = scmp.le.s32.totalorder 2, %s21
      // Predicated region
      $region77: #{tpu_custom_call.1} parent=5 // pred_check
        %p1312 = pneg %p1311
      $region78: #{tpu_custom_call.1} parent=5 // pred_check_branch
        %1314 = sbr.rel (%p1312) target = $region80
      $region79: #{tpu_custom_call.1} parent=5 // pred_region
        %s1315 = ssub.s32 %s21, 2
        // Predicated region
        $region81: #{tpu_custom_call.1} parent=79 // pred_check
          %p1316 = pneg %p244
        $region82: #{tpu_custom_call.1} parent=79 // pred_check_branch
          %1318 = sbr.rel (%p1316) target = $region84
        $region83: #{tpu_custom_call.1} parent=79 // pred_region
          %s1319 = smul.u32 32, %s27
          %p1320 = scmp.lt.s32.totalorder %s1319, 127
          %s1321 = scalar_select %p1320, %s1319, 127
          %s1322 = smul.addr %s1321, 8
          %s1323 = scalar_lea.vmem %s9, %s1322
        $region84: #{tpu_custom_call.1} parent=79 // pred_fallthru
          _
      $region80: #{tpu_custom_call.1} parent=5 // pred_fallthru
        _
    $region6: #{tpu_custom_call.1} parent=1 // loop_footer
      %s25 = sadd.s32 1, %s21
    $region7: #{tpu_custom_call.1} parent=1 // loop_footer_branch
      %20 = sbr.rel target = $region3
    $region8: #{tpu_custom_call.1} parent=1 // loop_exit
      _
    %1324 = vsyncpa [#allocation4], 1
    %s1325 = scalar_lea.sflag [#allocation4], 1
    %1326 = vsyncpa %s1325, 1
    %1327 = vsyncpa [#allocation6], 1
    %1328 = vsyncpa [#allocation9], 1

</llo_original>
